<compile_context>
chip_gen: v7x
topology: tpu7x:2x2x1
jax: 0.10.0
libtpu: 0.0.40
codegen_flags: <defaults>
</compile_context>

<pallas_src>
import functools
import math

import jax
import jax.numpy as jnp
from jax.experimental import pallas as pl
from jax.experimental.pallas import tpu as pltpu


# ----------------------------------------------------------------------------
# Kernel: out = emb + pe   (pe broadcast over the batch rows in the block)
# ----------------------------------------------------------------------------
def _add_pe_kernel(emb_ref, pe_ref, out_ref):
    # emb_ref/out_ref: (bt, lt*C) lane-dense tile; pe_ref: (1, lt*C) float32.
    x = emb_ref[...].astype(jnp.float32)
    out_ref[...] = (x + pe_ref[...]).astype(out_ref.dtype)


# ----------------------------------------------------------------------------
# PE table: same math as the PyTorch registered buffer, built without scatters
# and cached per (L, C) so the hot path never rebuilds it.
# ----------------------------------------------------------------------------
@functools.lru_cache(maxsize=16)
def _pe_table(L, C):
    position = jnp.arange(L, dtype=jnp.float32)[:, None]                   # [L, 1]
    div_term = jnp.exp(jnp.arange(0, C, 2, dtype=jnp.float32)
                       * (-math.log(10000.0) / C))                          # [C//2]
    angles = position * div_term                                            # [L, C//2]
    # Interleave: pe[:, 0::2] = sin, pe[:, 1::2] = cos.
    pe = jnp.stack([jnp.sin(angles), jnp.cos(angles)], axis=-1).reshape(L, C)
    return pe


# ----------------------------------------------------------------------------
# Tiling heuristic (lane-dense blocks of the (B, L*C)-flattened embedding)
# ----------------------------------------------------------------------------
_TARGET_BLOCK_BYTES = 4 * 1024 * 1024   # ~4 MiB per block (see revision notes)


def _choose_tiles(B, L, C, itemsize):
    """Pick (bt, lt) so the block is (bt, lt*C) of the (B, L*C) array.

    Legality kept explicit:
      * bt is a multiple of 8 or equals B            (sublane dim of the block)
      * lt*C is a multiple of 128 or lt equals L     (lane dim of the block)
    """
    lane_step = 128 // math.gcd(C, 128)     # smallest lt with lt*C % 128 == 0
    row_bytes = L * C * itemsize

    # --- batch tile: sublane-legal, and keep >=4 batch tiles for large B ---
    if B <= 8:
        bt = B
    else:
        rows_fit = max(1, _TARGET_BLOCK_BYTES // max(row_bytes, 1))
        bt = min(rows_fit, B // 4)          # leave >= ~4 batch steps (megacore/pipeline)
        bt = max(8, (bt // 8) * 8)          # multiple of 8
        bt = min(bt, B)

    # --- lane tile: full rows if they fit, else tile L in lane_step granules ---
    if bt * row_bytes <= _TARGET_BLOCK_BYTES or L <= lane_step:
        lt = L
    else:
        lt = (_TARGET_BLOCK_BYTES // (bt * C * itemsize)) // lane_step * lane_step
        lt = max(lane_step, lt)
        lt = min(lt, L)
    return bt, lt


# ----------------------------------------------------------------------------
# Wrapper
# ----------------------------------------------------------------------------
def positional_encoding_forward(emb: jax.Array, max_len: int = 1000) -> jax.Array:
    """emb: [B, L, C]. Returns emb + pe[:L] (broadcast over B).

    Output dtype follows PyTorch promotion against the float32 buffer
    (float32 for sub-f32 inputs, unchanged for float32 inputs).
    """
    B, L, C = emb.shape
    if C % 2 != 0:
        raise ValueError(
            "Cannot use sin/cos positional encoding with odd dim (got dim={:d})".format(C)
        )
    if L > max_len:
        raise ValueError("sequence length exceeds max_len")

    out_dtype = jnp.promote_types(emb.dtype, jnp.float32)
    in_itemsize = jnp.dtype(emb.dtype).itemsize
    out_itemsize = jnp.dtype(out_dtype).itemsize

    # Lane-dense layout: flatten (L, C) into the last dim.
    pe = _pe_table(L, C).reshape(1, L * C)        # [1, L*C] f32 (cached)
    emb2 = emb.reshape(B, L * C)                  # [B, L*C]

    bt, lt = _choose_tiles(B, L, C, max(in_itemsize, out_itemsize))
    lane = lt * C
    grid = (pl.cdiv(L, lt), pl.cdiv(B, bt))       # batch innermost -> PE block stays put

    # VMEM budget: double-buffered input, output and PE blocks, plus headroom.
    in_bytes = bt * lane * in_itemsize
    out_bytes = bt * lane * out_itemsize
    pe_bytes = lane * 4
    vmem_needed = 2 * (in_bytes + out_bytes + pe_bytes)
    vmem_limit = int(min(48 * 1024 * 1024,
                         max(vmem_needed + (8 << 20), 16 * 1024 * 1024)))

    cost = pl.CostEstimate(
        flops=B * L * C,
        transcendentals=0,
        bytes_accessed=B * L * C * (in_itemsize + out_itemsize) + L * C * 4,
    )

    out2 = pl.pallas_call(
        _add_pe_kernel,
        out_shape=jax.ShapeDtypeStruct((B, L * C), out_dtype),
        grid_spec=pltpu.PrefetchScalarGridSpec(
            num_scalar_prefetch=0,
            grid=grid,
            in_specs=[
                pl.BlockSpec((bt, lane), lambda l, b: (b, l)),   # embeddings
                pl.BlockSpec((1, lane), lambda l, b: (0, l)),    # PE table (resident)
            ],
            out_specs=pl.BlockSpec((bt, lane), lambda l, b: (b, l)),
        ),
        compiler_params=pltpu.CompilerParams(
            dimension_semantics=("parallel", "parallel"),
            vmem_limit_bytes=vmem_limit,
        ),
        cost_estimate=cost,
    )(emb2, pe)

    return out2.reshape(B, L, C)


# ----------------------------------------------------------------------------
# Plain-JAX reference (mirror of the PyTorch module) for verification
# ----------------------------------------------------------------------------
def _reference_forward(emb: jax.Array) -> jax.Array:
    B, L, C = emb.shape
    pe = _pe_table(L, C)
    out_dtype = jnp.promote_types(emb.dtype, jnp.float32)
    return (emb.astype(jnp.float32) + pe[None, :, :]).astype(out_dtype)


if __name__ == "__main__":
    key = jax.random.PRNGKey(0)

    # Case 1: batch=2, seq=8, hidden=32 (dim must be even), float32.
    emb = jax.random.normal(key, (2, 8, 32), dtype=jnp.float32)
    out = jax.block_until_ready(positional_encoding_forward(emb))
    ref = _reference_forward(emb)
    assert out.shape == emb.shape
    assert out.dtype == jnp.float32
    assert jnp.allclose(out, ref, atol=1e-5, rtol=1e-5), "mismatch vs reference (case 1)"

    # Case 2: a different (non-power-of-two) hidden size, still small.
    emb2 = jax.random.normal(jax.random.PRNGKey(1), (3, 24, 96), dtype=jnp.float32)
    out2 = jax.block_until_ready(positional_encoding_forward(emb2))
    ref2 = _reference_forward(emb2)
    assert out2.shape == emb2.shape
    assert jnp.allclose(out2, ref2, atol=1e-5, rtol=1e-5), "mismatch vs reference (case 2)"

    print("KERNEL_OK")
</pallas_src>

<mosaic_0001>
module attributes {stable_mosaic.version = 11 : i64} {
  func.func @_add_pe_kernel(%arg0: i32, %arg1: i32, %arg2: memref<2x256xf32, #tpu.memory_space<vmem>>, %arg3: memref<1x256xf32, #tpu.memory_space<vmem>>, %arg4: memref<2x256xf32, #tpu.memory_space<vmem>>) attributes {dimension_semantics = [#tpu.dimension_semantics<parallel>, #tpu.dimension_semantics<parallel>], iteration_bounds = array<i64: 1, 1>, scalar_prefetch = 0 : i64, scratch_operands = 0 : i64, tpu.core_type = #tpu.core_type<tc>, window_params = [{transform_indices = @transform_0, window_bounds = array<i64: 2, 256>}, {transform_indices = @transform_1, window_bounds = array<i64: 1, 256>}, {transform_indices = @transform_2, window_bounds = array<i64: 2, 256>}]} {
    %c0 = arith.constant 0 : index
    %c0_0 = arith.constant 0 : index
    %0 = vector.load %arg2[%c0, %c0_0] : memref<2x256xf32, #tpu.memory_space<vmem>>, vector<2x256xf32>
    %c0_1 = arith.constant 0 : index
    %c0_2 = arith.constant 0 : index
    %1 = vector.load %arg3[%c0_1, %c0_2] : memref<1x256xf32, #tpu.memory_space<vmem>>, vector<1x256xf32>
    %2 = vector.broadcast %1 : vector<1x256xf32> to vector<2x256xf32>
    %3 = arith.addf %0, %2 : vector<2x256xf32>
    %c0_3 = arith.constant 0 : index
    %c0_4 = arith.constant 0 : index
    %4 = vector.load %arg4[%c0_3, %c0_4] : memref<2x256xf32, #tpu.memory_space<vmem>>, vector<2x256xf32>
    tpu.vector_store %arg4[%c0_3, %c0_4], %3 {strides = array<i32>} : memref<2x256xf32, #tpu.memory_space<vmem>>, vector<2x256xf32>,
    return
  }
  func.func @transform_0(%arg0: i32, %arg1: i32) -> (i32, i32) {
    %c0_i32 = arith.constant 0 : i32
    return %arg1, %arg0 : i32, i32
  }
  func.func @transform_1(%arg0: i32, %arg1: i32) -> (i32, i32) {
    %c0_i32 = arith.constant 0 : i32
    %c0_i32_0 = arith.constant 0 : i32
    return %c0_i32, %arg0 : i32, i32
  }
  func.func @transform_2(%arg0: i32, %arg1: i32) -> (i32, i32) {
    %c0_i32 = arith.constant 0 : i32
    return %arg1, %arg0 : i32, i32
  }
}

</mosaic_0001>

<llo_original>
// kernel: tpu_custom_call.1
$region0: #{tpu_custom_call.1}
  #allocation0 [shape = 'u32[]', space=smem, size = 0x4, offset = 0x4, fixed_abs, tag = 'smem constant byte address 0x4 - core index']
  #allocation1 [shape = 'u32[144,128]{1,0:T(1,128)}', space=vmem, size = 0x12000, scoped, tag = 'internal scratch']
  %s0 = inlined_call_operand.hbm [shape: f32[2,256], index: 0, kind: input, shape index: {}]
  %s1 = inlined_call_operand.vmem [shape: f32[1,256], index: 1, kind: input, shape index: {}]
  %s2 = inlined_call_operand.hbm [shape: f32[2,256], index: 2, kind: output, shape index: {}]
  %s3 = sld [smem:[#allocation0]]
  $region22: #{tpu_custom_call.1} parent=0
    _
  %s5 = ssub.s32 1, %s3
  %s6 = scalar_select 0, %s5, %s3
  $region1: #{tpu_custom_call.1} parent=0
    #allocation2 [shape = 'u8[2048]{0}', space=vmem, size = 0x800, scoped, tag = 'input window, operand 0, single buffered']
    #allocation3 [shape = 's32[1]{0}', space=sflag, size = 0x4, scoped, tag = 'scoped memory for tpu_custom_call.1']
    #allocation4 [shape = 's32[1]{0}', space=sflag, size = 0x4, scoped, tag = 'scoped memory for tpu_custom_call.1']
    #allocation5 [shape = 'u8[2048]{0}', space=vmem, size = 0x800, scoped, tag = 'output window, operand 0, single buffered']
    %7 = vsyncpa [#allocation3], 0
    %8 = vsyncpa [#allocation4], 0
    // Predicated region
    $region2: #{tpu_custom_call.1} parent=1 // pred_check
      _
    $region3: #{tpu_custom_call.1} parent=1 // pred_check_branch
      %10 = sbr.rel (0) target = $region5
    $region4: #{tpu_custom_call.1} parent=1 // pred_region
      %s12 = ssub.s32 64, 64
      %13 = vsyncadd [#allocation3], %s12
      %s15 = sshll.u32 [#allocation2], 4
      %s16 = int_to_ptr.vmem [resolvable:$true] %s15
      %18 = dma.hbm_to_vmem [thread:$0]  %s0, 64, %s16, [#allocation3]
    $region5: #{tpu_custom_call.1} parent=1 // pred_fallthru
      _
    // Predicated region
    $region6: #{tpu_custom_call.1} parent=1 // pred_check
      _
    $region7: #{tpu_custom_call.1} parent=1 // pred_check_branch
      %20 = sbr.rel (0) target = $region9
    $region8: #{tpu_custom_call.1} parent=1 // pred_region
      _
    $region9: #{tpu_custom_call.1} parent=1 // pred_fallthru
      _
    // Predicated region
    $region10: #{tpu_custom_call.1} parent=1 // pred_check
      _
    $region11: #{tpu_custom_call.1} parent=1 // pred_check_branch
      %22 = sbr.rel (0) target = $region13
    $region12: #{tpu_custom_call.1} parent=1 // pred_region
      %23 = dma.done [#allocation3], 64
    $region13: #{tpu_custom_call.1} parent=1 // pred_fallthru
      _
    %v24 = vld [vmem:[#allocation2] sm:$0xf]
    %v25 = vld [vmem:[%s1] sm:$0x3]
    %v27 = vlaneseq
    %v28 = vshrl.u32 %v27, 7
    %v29 = vsub.s32 0, %v28
    %v30 = vrot.slane %v25, %v29
    %v31 = vlaneseq
    %v32 = vshrl.u32 %v31, 7
    %v33 = vsub.s32 1, %v32
    %v34 = vrot.slane %v25, %v33
    %v35 = vcombine.low %v30, %v34
    %v37 = vunpack.c.l.s4 1983009808
    %v38 = vunpack.c.0.s8 %v37
    %v39 = vlaneseq
    %v40 = vshrl.u32 %v39, 7
    %v41 = vsub.s32 %v38, %v40
    %v42 = vrot.slane %v35, %v41
    %v44 = vadd.f32 %v24, %v42
    %45 = vst [vmem:[#allocation5] sm:$0xf] %v44
    // Predicated region
    $region14: #{tpu_custom_call.1} parent=1 // pred_check
      _
    $region15: #{tpu_custom_call.1} parent=1 // pred_check_branch
      %47 = sbr.rel (0) target = $region17
    $region16: #{tpu_custom_call.1} parent=1 // pred_region
      %s49 = ssub.s32 64, 64
      %50 = vsyncadd [#allocation4], %s49
      %s52 = sshll.u32 [#allocation5], 4
      %s53 = int_to_ptr.vmem [resolvable:$true] %s52
      %55 = dma.vmem_to_hbm [thread:$0]  %s53, 64, %s2, [#allocation4]
    $region17: #{tpu_custom_call.1} parent=1 // pred_fallthru
      _
    // Predicated region
    $region18: #{tpu_custom_call.1} parent=1 // pred_check
      _
    $region19: #{tpu_custom_call.1} parent=1 // pred_check_branch
      %57 = sbr.rel (0) target = $region21
    $region20: #{tpu_custom_call.1} parent=1 // pred_region
      %58 = dma.done [#allocation4], 64
    $region21: #{tpu_custom_call.1} parent=1 // pred_fallthru
      _
    %59 = vsyncpa [#allocation3], 1
    %60 = vsyncpa [#allocation4], 1

</llo_original>
